<compile_context>
chip_gen: v5e
topology: v5e:2x2
jax: 0.10.0
libtpu: 0.0.40
codegen_flags: <defaults>
</compile_context>

<pallas_src>
import functools

import jax
import jax.numpy as jnp
from jax.experimental import pallas as pl
from jax.experimental.pallas import tpu as pltpu

NUM_CLASSES = 6
EPS = 1e-07
_LANE = 128
_TILE_CAP = 65536                      # lanes per grid step (~1.5 MiB f32 logits / step)
_VMEM_LIMIT = 48 * 1024 * 1024         # comfortable on v5e/v6e (128 MiB) and v7x (64 MiB)


def _ceil_div(a, b):
    return -(-a // b)


def _pick_tile(hw, cap=_TILE_CAP):
    """Smallest multiple of 128 covering hw, capped (tail handled by in-kernel mask)."""
    return min(_ceil_div(hw, _LANE) * _LANE, cap)


def _focal_kernel(logits_ref, labels_ref, weight_ref, out_ref, *,
                  gamma, hw, tile_n, n_inner, needs_mask):
    """One grid step: a (C, TN) pixel tile of one batch element.

    out_ref is the per-(batch, outer-chunk) lane-dense (1, TN) accumulator block; its
    block index is constant along the innermost grid axis, so it stays resident in VMEM
    and is written back to HBM once per (batch, outer) pair.
    """
    i = pl.program_id(2)

    @pl.when(i == 0)
    def _():
        out_ref[...] = jnp.zeros_like(out_ref)

    x = logits_ref[...].astype(jnp.float32)                 # (C, TN) logits (native dtype in HBM)
    # class-axis (sublane) softmax pieces; only exp stays at (C, TN)
    m = jnp.max(x, axis=0, keepdims=True)                   # (1, TN)
    e = jnp.exp(x - m)                                      # (C, TN)  EUP
    s = jnp.sum(e, axis=0, keepdims=True)                   # (1, TN)

    lbl = labels_ref[...].astype(jnp.int32)                 # (1, TN) class ids (any int dtype)
    cls_ids = jax.lax.broadcasted_iota(jnp.int32, x.shape, 0)
    onehot = cls_ids == lbl                                 # (C, TN) bool mask (no f32 cast / mul)

    # Collapse the class axis: only the one-hot class contributes downstream.
    e_true = jnp.sum(jnp.where(onehot, e, 0.0), axis=0, keepdims=True)                # (1, TN)
    w_true = jnp.sum(jnp.where(onehot, weight_ref[...], 0.0), axis=0, keepdims=True)  # (1, TN)

    inv_s = pl.reciprocal(s, approx=True)                   # EUP slot; EPS absorbs the approx err
    p_true = e_true * inv_s                                 # softmax prob of the true class
    one_minus = 1.0 - p_true

    # (1 - p)^gamma: multiply chain for integer gamma (keeps the single EUP slot free);
    # jnp.power fallback only for genuinely non-integer gamma.
    if isinstance(gamma, int):
        mod = None if gamma <= 0 else one_minus
        for _ in range(gamma - 1):
            mod = mod * one_minus
    else:
        mod = jnp.power(one_minus, gamma)

    # Per-pixel focal term; accumulated with a subtract so the explicit negation folds
    # away.  Every valid term is finite (p in (0,1], EPS inside the log, finite weights),
    # so torch.nansum / torch.nanmean reduce to plain sum / mean.  Out-of-range label
    # values contribute 0 (all-false one-hot), matching the JAX one_hot reference.
    contrib = w_true * jnp.log(p_true + EPS)
    if mod is not None:
        contrib = mod * contrib

    if needs_mask:
        # Ragged H*W (tail tile) and/or padding tiles from the outer split: zero out
        # lanes past the real pixel count.  Padded input lanes may hold garbage (even
        # NaN) -> contrib is discarded there by the select, never by arithmetic.
        o = pl.program_id(1)
        lane = jax.lax.broadcasted_iota(jnp.int32, contrib.shape, 1)
        pix = (o * n_inner + i) * tile_n + lane
        contrib = jnp.where(pix < hw, contrib, 0.0)

    out_ref[...] -= contrib


def focal_loss_z(preds, labels, weight, gamma=2, tile_n=None):
    """preds: (B, C, H, W) logits; labels: (B, 1, H, W) int class ids; weight: (C,) / (C, 1).

    Matches Focal_Loss_z.forward:
        mean over B*H*W of  sum_c -weight[c] * (1 - softmax(preds)[c])**gamma
                                   * log(softmax(preds)[c] + eps) * onehot[c]
    """
    B, C, H, W = preds.shape
    HW = H * W
    N = B * HW

    # integral float gammas (e.g. 2.0) take the cheap multiply-chain path
    if isinstance(gamma, float) and float(gamma).is_integer():
        gamma = int(gamma)

    if tile_n is None:
        tile_n = _pick_tile(HW)
    assert tile_n % _LANE == 0

    n_tiles = _ceil_div(HW, tile_n)
    # Second "parallel" axis over pixel super-chunks so both v7x TensorCores get work
    # even when B == 1 (no measured effect on single-TC v5e/v6e).
    n_outer = 2 if n_tiles >= 2 else 1
    n_inner = _ceil_div(n_tiles, n_outer)
    needs_mask = (n_outer * n_inner * tile_n) != HW
    needs_clamp = (n_outer * n_inner) > n_tiles
    last_tile = n_tiles - 1

    # ---- glue: free reshapes only; no dtype coercion, no transpose, no padding ----
    logits = preds.reshape(B, C, HW)
    lbl = labels.reshape(B, 1, HW)
    w_col = jnp.asarray(weight, jnp.float32).reshape(C, 1)

    def pix_map(b, o, i):
        t = o * n_inner + i
        if needs_clamp:
            # padding tiles of the outer split re-read the last real tile; their lanes
            # are zeroed by the in-kernel mask, so this only keeps the DMA in-bounds.
            t = jnp.minimum(t, last_tile)
        return (b, 0, t)

    kernel = functools.partial(_focal_kernel, gamma=gamma, hw=HW, tile_n=tile_n,
                               n_inner=n_inner, needs_mask=needs_mask)

    partial_sums = pl.pallas_call(
        kernel,
        out_shape=jax.ShapeDtypeStruct((B, n_outer, 1, tile_n), jnp.float32),
        grid_spec=pltpu.PrefetchScalarGridSpec(
            num_scalar_prefetch=0,
            grid=(B, n_outer, n_inner),
            in_specs=[
                pl.BlockSpec((None, C, tile_n), pix_map),        # logits tile
                pl.BlockSpec((None, 1, tile_n), pix_map),        # labels tile
                pl.BlockSpec((C, 1), lambda b, o, i: (0, 0)),    # class weights (resident)
            ],
            out_specs=pl.BlockSpec((None, None, 1, tile_n),
                                   lambda b, o, i: (b, o, 0, 0)),
        ),
        compiler_params=pltpu.CompilerParams(
            dimension_semantics=("parallel", "parallel", "arbitrary"),
            vmem_limit_bytes=_VMEM_LIMIT),
    )(logits, lbl, w_col)

    # TODO(synk): for very small H*W with large B, blocking several batch elements per
    # grid step would further amortize the ~0.35us per-step overhead.

    # Final cross-lane reduction + mean (nanmean == mean: every accumulated term is finite).
    return jnp.sum(partial_sums) / N


def _reference(preds, labels, weight, gamma=2):
    """Pure-JAX mirror of the PyTorch forward (for verification)."""
    B, C, H, W = preds.shape
    onehot = jax.nn.one_hot(labels[:, 0], C, axis=1, dtype=jnp.float32)   # (B,C,H,W)
    p = jax.nn.softmax(preds.astype(jnp.float32), axis=1)
    yp = p.reshape(B, C, -1)
    t = onehot.reshape(B, C, -1)
    ce = -jnp.log(yp + EPS) * t
    fl = jnp.power(1.0 - yp, gamma) * ce
    fl = fl * jnp.asarray(weight, jnp.float32).reshape(C, 1)
    fl = jnp.sum(fl, axis=1)          # nansum over classes (finite here)
    return jnp.mean(fl)               # nanmean


if __name__ == "__main__":
    key = jax.random.PRNGKey(0)

    def run_case(B, H, W, gamma, dtype, tile_n=None, seed_offset=0):
        k1, k2 = jax.random.split(jax.random.fold_in(key, seed_offset))
        preds = jax.random.normal(k1, (B, NUM_CLASSES, H, W), dtype=jnp.float32).astype(dtype)
        labels = jax.random.randint(k2, (B, 1, H, W), 0, NUM_CLASSES, dtype=jnp.int32)
        weight = (jnp.arange(1, NUM_CLASSES + 1, dtype=jnp.float32)
                  / NUM_CLASSES).reshape(NUM_CLASSES, 1)
        loss = jax.block_until_ready(
            focal_loss_z(preds, labels, weight, gamma=gamma, tile_n=tile_n))
        ref = _reference(preds, labels, weight, gamma=int(gamma))
        # tolerance covers the approx-reciprocal perturbation (~1e-3 relative worst case)
        assert jnp.allclose(loss, ref, rtol=5e-3, atol=1e-5), (B, H, W, float(loss), float(ref))

    # primary: divisible H*W, single tile per batch element
    run_case(2, 16, 16, gamma=2, dtype=jnp.float32)
    # ragged H*W (not a multiple of 128): masked tail tile, bf16 logits kept native
    run_case(2, 10, 10, gamma=2, dtype=jnp.bfloat16, seed_offset=1)
    # multi-tile pixel axis with the outer "parallel" split (B=1 still fills both v7x
    # cores); odd tile count exercises the clamped padding tile; float gamma coerced
    run_case(1, 18, 18, gamma=2.0, dtype=jnp.float32, tile_n=128, seed_offset=2)

    print("KERNEL_OK")
</pallas_src>

<mosaic_0001>
module attributes {stable_mosaic.version = 11 : i64} {
  func.func @_focal_kernel(%arg0: i32, %arg1: i32, %arg2: i32, %arg3: memref<1x6x256xf32, #tpu.memory_space<vmem>>, %arg4: memref<1x1x256xi32, #tpu.memory_space<vmem>>, %arg5: memref<6x1xf32, #tpu.memory_space<vmem>>, %arg6: memref<1x1x1x256xf32, #tpu.memory_space<vmem>>) attributes {dimension_semantics = [#tpu.dimension_semantics<parallel>, #tpu.dimension_semantics<parallel>, #tpu.dimension_semantics<arbitrary>], iteration_bounds = array<i64: 2, 1, 1>, scalar_prefetch = 0 : i64, scratch_operands = 0 : i64, tpu.core_type = #tpu.core_type<tc>, window_params = [{transform_indices = @transform_0, window_bounds = array<i64: 1, 6, 256>}, {transform_indices = @transform_1, window_bounds = array<i64: 1, 1, 256>}, {pipeline_mode = #tpu.pipeline_mode<synchronous>, transform_indices = @transform_2, window_bounds = array<i64: 6, 1>}, {transform_indices = @transform_3, window_bounds = array<i64: 1, 1, 1, 256>}]} {
    %c0_i32 = arith.constant 0 : i32
    %0 = arith.cmpi eq, %arg2, %c0_i32 : i32
    %1 = arith.extui %0 : i1 to i32
    %c0_i32_0 = arith.constant 0 : i32
    %2 = arith.cmpi ne, %1, %c0_i32_0 : i32
    scf.if %2 {
      %cst_23 = arith.constant 0.000000e+00 : f32
      %44 = vector.broadcast %cst_23 : f32 to vector<1x256xf32>
      %c0_24 = arith.constant 0 : index
      %c0_25 = arith.constant 0 : index
      %c0_26 = arith.constant 0 : index
      %c0_27 = arith.constant 0 : index
      %45 = vector.load %arg6[%c0_24, %c0_25, %c0_26, %c0_27] : memref<1x1x1x256xf32, #tpu.memory_space<vmem>>, vector<1x1x1x256xf32>
      %46 = vector.shape_cast %45 : vector<1x1x1x256xf32> to vector<1x256xf32>
      %47 = vector.shape_cast %44 : vector<1x256xf32> to vector<1x1x1x256xf32>
      tpu.vector_store %arg6[%c0_24, %c0_25, %c0_26, %c0_27], %47 {strides = array<i32>} : memref<1x1x1x256xf32, #tpu.memory_space<vmem>>, vector<1x1x1x256xf32>,
    } else {
    }
    %c0 = arith.constant 0 : index
    %c0_1 = arith.constant 0 : index
    %c0_2 = arith.constant 0 : index
    %3 = vector.load %arg3[%c0, %c0_1, %c0_2] : memref<1x6x256xf32, #tpu.memory_space<vmem>>, vector<1x6x256xf32>
    %4 = vector.shape_cast %3 : vector<1x6x256xf32> to vector<6x256xf32>
    %cst = arith.constant dense<0xFF800000> : vector<256xf32>
    %5 = vector.multi_reduction <maximumf>, %4, %cst [0] : vector<6x256xf32> to vector<256xf32>
    %6 = vector.shape_cast %5 : vector<256xf32> to vector<1x256xf32>
    %7 = vector.broadcast %6 : vector<1x256xf32> to vector<6x256xf32>
    %8 = arith.subf %4, %7 : vector<6x256xf32>
    %9 = math.exp %8 : vector<6x256xf32>
    %cst_3 = arith.constant dense<0.000000e+00> : vector<256xf32>
    %10 = vector.multi_reduction <add>, %9, %cst_3 [0] : vector<6x256xf32> to vector<256xf32>
    %11 = vector.shape_cast %10 : vector<256xf32> to vector<1x256xf32>
    %c0_4 = arith.constant 0 : index
    %c0_5 = arith.constant 0 : index
    %c0_6 = arith.constant 0 : index
    %12 = vector.load %arg4[%c0_4, %c0_5, %c0_6] : memref<1x1x256xi32, #tpu.memory_space<vmem>>, vector<1x1x256xi32>
    %13 = vector.shape_cast %12 : vector<1x1x256xi32> to vector<1x256xi32>
    %14 = tpu.iota {dimensions = array<i32: 0>} : vector<6x256xi32>
    %15 = vector.broadcast %13 : vector<1x256xi32> to vector<6x256xi32>
    %16 = arith.cmpi eq, %14, %15 : vector<6x256xi32>
    %cst_7 = arith.constant 0.000000e+00 : f32
    %17 = vector.broadcast %cst_7 : f32 to vector<6x256xf32>
    %18 = arith.select %16, %9, %17 : vector<6x256xi1>, vector<6x256xf32>
    %cst_8 = arith.constant dense<0.000000e+00> : vector<256xf32>
    %19 = vector.multi_reduction <add>, %18, %cst_8 [0] : vector<6x256xf32> to vector<256xf32>
    %20 = vector.shape_cast %19 : vector<256xf32> to vector<1x256xf32>
    %c0_9 = arith.constant 0 : index
    %c0_10 = arith.constant 0 : index
    %21 = vector.load %arg5[%c0_9, %c0_10] : memref<6x1xf32, #tpu.memory_space<vmem>>, vector<6x1xf32>
    %cst_11 = arith.constant 0.000000e+00 : f32
    %22 = vector.shape_cast %21 : vector<6x1xf32> to vector<6x1xf32>
    %23 = vector.broadcast %22 : vector<6x1xf32> to vector<6x256xf32>
    %24 = vector.broadcast %cst_11 : f32 to vector<6x256xf32>
    %25 = arith.select %16, %23, %24 : vector<6x256xi1>, vector<6x256xf32>
    %cst_12 = arith.constant dense<0.000000e+00> : vector<256xf32>
    %26 = vector.multi_reduction <add>, %25, %cst_12 [0] : vector<6x256xf32> to vector<256xf32>
    %27 = vector.shape_cast %26 : vector<256xf32> to vector<1x256xf32>
    %28 = tpu.reciprocal %11 {approx = true} : vector<1x256xf32> -> vector<1x256xf32>
    %29 = arith.mulf %20, %28 : vector<1x256xf32>
    %cst_13 = arith.constant 1.000000e+00 : f32
    %30 = vector.broadcast %cst_13 : f32 to vector<1x256xf32>
    %31 = arith.subf %30, %29 : vector<1x256xf32>
    %32 = arith.mulf %31, %31 : vector<1x256xf32>
    %cst_14 = arith.constant 1.000000e-07 : f32
    %33 = vector.broadcast %cst_14 : f32 to vector<1x256xf32>
    %34 = arith.addf %29, %33 : vector<1x256xf32>
    %35 = math.log %34 : vector<1x256xf32>
    %36 = arith.mulf %27, %35 : vector<1x256xf32>
    %37 = arith.mulf %32, %36 : vector<1x256xf32>
    %c0_15 = arith.constant 0 : index
    %c0_16 = arith.constant 0 : index
    %c0_17 = arith.constant 0 : index
    %c0_18 = arith.constant 0 : index
    %38 = vector.load %arg6[%c0_15, %c0_16, %c0_17, %c0_18] : memref<1x1x1x256xf32, #tpu.memory_space<vmem>>, vector<1x1x1x256xf32>
    %39 = vector.shape_cast %38 : vector<1x1x1x256xf32> to vector<1x256xf32>
    %40 = arith.subf %39, %37 : vector<1x256xf32>
    %c0_19 = arith.constant 0 : index
    %c0_20 = arith.constant 0 : index
    %c0_21 = arith.constant 0 : index
    %c0_22 = arith.constant 0 : index
    %41 = vector.load %arg6[%c0_19, %c0_20, %c0_21, %c0_22] : memref<1x1x1x256xf32, #tpu.memory_space<vmem>>, vector<1x1x1x256xf32>
    %42 = vector.shape_cast %41 : vector<1x1x1x256xf32> to vector<1x256xf32>
    %43 = vector.shape_cast %40 : vector<1x256xf32> to vector<1x1x1x256xf32>
    tpu.vector_store %arg6[%c0_19, %c0_20, %c0_21, %c0_22], %43 {strides = array<i32>} : memref<1x1x1x256xf32, #tpu.memory_space<vmem>>, vector<1x1x1x256xf32>,
    return
  }
  func.func @transform_0(%arg0: i32, %arg1: i32, %arg2: i32) -> (i32, i32, i32) {
    %c1_i32 = arith.constant 1 : i32
    %0 = arith.muli %arg1, %c1_i32 : i32
    %1 = arith.addi %0, %arg2 : i32
    %c0_i32 = arith.constant 0 : i32
    %c0_i32_0 = arith.constant 0 : i32
    return %arg0, %c0_i32, %1 : i32, i32, i32
  }
  func.func @transform_1(%arg0: i32, %arg1: i32, %arg2: i32) -> (i32, i32, i32) {
    %c1_i32 = arith.constant 1 : i32
    %0 = arith.muli %arg1, %c1_i32 : i32
    %1 = arith.addi %0, %arg2 : i32
    %c0_i32 = arith.constant 0 : i32
    %c0_i32_0 = arith.constant 0 : i32
    return %arg0, %c0_i32, %1 : i32, i32, i32
  }
  func.func @transform_2(%arg0: i32, %arg1: i32, %arg2: i32) -> (i32, i32) {
    %c0_i32 = arith.constant 0 : i32
    %c0_i32_0 = arith.constant 0 : i32
    %c0_i32_1 = arith.constant 0 : i32
    return %c0_i32, %c0_i32_0 : i32, i32
  }
  func.func @transform_3(%arg0: i32, %arg1: i32, %arg2: i32) -> (i32, i32, i32, i32) {
    %c0_i32 = arith.constant 0 : i32
    %c0_i32_0 = arith.constant 0 : i32
    %c0_i32_1 = arith.constant 0 : i32
    return %arg0, %arg1, %c0_i32, %c0_i32_0 : i32, i32, i32, i32
  }
}

</mosaic_0001>

<llo_original>
// kernel: tpu_custom_call.1
$region0: #{tpu_custom_call.1}
  #allocation0 [shape = 'u32[]', space=smem, size = 0x4, offset = 0x4, fixed_abs, tag = 'smem constant byte address 0x4 - core index']
  #allocation1 [shape = 'u32[72,128]{1,0:T(1,128)}', space=vmem, size = 0x9000, scoped, tag = 'internal scratch']
  %s0 = inlined_call_operand.vmem [shape: f32[2,6,256], index: 0, kind: input, shape index: {}]
  %s1 = inlined_call_operand.vmem [shape: s32[2,1,256], index: 1, kind: input, shape index: {}]
  %s2 = inlined_call_operand.vmem [shape: f32[6,1], index: 2, kind: input, shape index: {}]
  %s3 = inlined_call_operand.hbm [shape: f32[2,1,1,256], index: 3, kind: output, shape index: {}]
  %s4 = sld [smem:[#allocation0]]
  $region49: #{tpu_custom_call.1} parent=0
    _
  %s6 = ssub.s32 1, %s4
  %s7 = scalar_select 0, %s6, %s4
  $region1: #{tpu_custom_call.1} parent=0
    #allocation2 [shape = 'u8[2048]{0}', space=vmem, size = 0x800, scoped, tag = 'output window, operand 0']
    #allocation3 [shape = 's32[2]{0}', space=sflag, size = 0x8, scoped, tag = 'scoped memory for tpu_custom_call.1']
    %8 = vsyncpa [#allocation3], 0
    %s9 = scalar_lea.sflag [#allocation3], 1
    %10 = vsyncpa %s9, 0
    loop: start=0, step=1, limit=4
    $region2: #{tpu_custom_call.1} parent=1 // loop_pre_header
      _
    $region3: #{tpu_custom_call.1} parent=1 // loop_header
      %s12 = sphi 0, %s16
      %p13 = scmp.ge.s32.totalorder %s12, 4
      %s19 = sphi 0, %s38
      %s20 = sphi 0, %s34
      %s21 = sphi 0, %s30
      %s22 = sphi 0, %s19
      %s23 = sphi 0, %s20
      %s24 = sphi 0, %s21
      %s25 = sphi 0, %s22
      %s26 = sphi 0, %s23
      %s27 = sphi 0, %s24
      %s45 = sphi 0, %s47
      %s48 = sphi 0, %s45
      %s49 = sphi 0, %s48
      %s65 = sphi 0, %s49
      %s75 = sphi 0, %s77
      %s78 = sphi 0, %s75
      %s79 = sphi 0, %s78
      %s95 = sphi 0, %s79
      %s99 = sphi 0, %s99
      %s101 = sphi 0, %s99
      %s102 = sphi 0, %s101
      %s116 = sphi 0, %s102
      %s124 = sphi 0, %s126
      %s127 = sphi 0, %s124
      %s128 = sphi 0, %s127
      %s144 = sphi 0, %s128
    $region4: #{tpu_custom_call.1} parent=1 // loop_header_branch
      %15 = sbr.rel (%p13) target = $region8
    $region5: #{tpu_custom_call.1} parent=1 // loop_body
      %s17 = ssub.s32 %s12, 1
      %s18 = ssub.s32 %s12, 2
      %s28 = sadd.s32 1, %s21
      %p29 = scmp.ge.s32.totalorder %s28, 1
      %s30 = scalar_select %p29, 0, %s28
      %s31 = sadd.s32 1, %s20
      %s32 = scalar_select %p29, %s31, %s20
      %p33 = scmp.ge.s32.totalorder %s32, 1
      %s34 = scalar_select %p33, 0, %s32
      %s35 = sadd.s32 1, %s19
      %s36 = scalar_select %p33, %s35, %s19
      %p37 = scmp.ge.s32.totalorder %s36, 2
      %s38 = scalar_select %p37, 0, %s36
      %s39 = sadd.s32 %s20, %s21
      %s40 = sadd.s32 %s34, %s30
      %s41 = ssub.s32 %s19, %s38
      %s42 = ssub.s32 %s39, %s40
      %s43 = sor.u32 %s41, %s42
      %p44 = scmp.eq.s32.totalorder %s43, 0
      %s46 = sadd.s32 %s45, 1
      %s47 = scalar_select %p44, %s45, %s46
      %p50 = pneg %p44
      %p51 = scmp.eq.s32.totalorder %s12, 1
      %p52 = por %p50, %p51
      %p53 = scmp.ne.s32.totalorder %s45, %s48
      %p54 = scmp.eq.s32.totalorder %s12, 0
      %p55 = por %p53, %p54
      %p56 = scmp.ne.s32.totalorder %s45, %s48
      %p57 = scmp.eq.s32.totalorder %s17, 1
      %p58 = por %p56, %p57
      %p59 = scmp.ne.s32.totalorder %s48, %s49
      %p60 = scmp.eq.s32.totalorder %s17, 0
      %p61 = por %p59, %p60
      %p62 = scmp.ne.s32.totalorder %s48, %s49
      %p63 = scmp.eq.s32.totalorder %s18, 1
      %p64 = por %p62, %p63
      %p66 = scmp.ne.s32.totalorder %s49, %s65
      %p67 = scmp.eq.s32.totalorder %s18, 0
      %p68 = por %p66, %p67
      %s69 = sadd.s32 %s20, %s21
      %s70 = sadd.s32 %s34, %s30
      %s71 = ssub.s32 %s19, %s38
      %s72 = ssub.s32 %s69, %s70
      %s73 = sor.u32 %s71, %s72
      %p74 = scmp.eq.s32.totalorder %s73, 0
      %s76 = sadd.s32 %s75, 1
      %s77 = scalar_select %p74, %s75, %s76
      %p80 = pneg %p74
      %p81 = scmp.eq.s32.totalorder %s12, 1
      %p82 = por %p80, %p81
      %p83 = scmp.ne.s32.totalorder %s75, %s78
      %p84 = scmp.eq.s32.totalorder %s12, 0
      %p85 = por %p83, %p84
      %p86 = scmp.ne.s32.totalorder %s75, %s78
      %p87 = scmp.eq.s32.totalorder %s17, 1
      %p88 = por %p86, %p87
      %p89 = scmp.ne.s32.totalorder %s78, %s79
      %p90 = scmp.eq.s32.totalorder %s17, 0
      %p91 = por %p89, %p90
      %p92 = scmp.ne.s32.totalorder %s78, %s79
      %p93 = scmp.eq.s32.totalorder %s18, 1
      %p94 = por %p92, %p93
      %p96 = scmp.ne.s32.totalorder %s79, %s95
      %p97 = scmp.eq.s32.totalorder %s18, 0
      %p98 = por %p96, %p97
      %s100 = sadd.s32 %s99, 1
      %p103 = scmp.eq.s32.totalorder %s12, 1
      %p104 = scmp.ne.s32.totalorder %s99, %s101
      %p105 = scmp.eq.s32.totalorder %s12, 0
      %p106 = por %p104, %p105
      %p107 = scmp.ne.s32.totalorder %s99, %s101
      %p108 = scmp.eq.s32.totalorder %s17, 1
      %p109 = por %p107, %p108
      %p110 = scmp.ne.s32.totalorder %s101, %s102
      %p111 = scmp.eq.s32.totalorder %s17, 0
      %p112 = por %p110, %p111
      %p113 = scmp.ne.s32.totalorder %s101, %s102
      %p114 = scmp.eq.s32.totalorder %s18, 1
      %p115 = por %p113, %p114
      %p117 = scmp.ne.s32.totalorder %s102, %s116
      %p118 = scmp.eq.s32.totalorder %s18, 0
      %p119 = por %p117, %p118
      %s120 = ssub.s32 %s19, %s38
      %s121 = ssub.s32 %s20, %s34
      %s122 = sor.u32 %s120, %s121
      %p123 = scmp.eq.s32.totalorder %s122, 0
      %s125 = sadd.s32 %s124, 1
      %s126 = scalar_select %p123, %s124, %s125
      %p129 = pneg %p123
      %p130 = scmp.eq.s32.totalorder %s12, 1
      %p131 = por %p129, %p130
      %p132 = scmp.ne.s32.totalorder %s124, %s127
      %p133 = scmp.eq.s32.totalorder %s12, 0
      %p134 = por %p132, %p133
      %p135 = scmp.ne.s32.totalorder %s124, %s127
      %p136 = scmp.eq.s32.totalorder %s17, 1
      %p137 = por %p135, %p136
      %p138 = scmp.ne.s32.totalorder %s127, %s128
      %p139 = scmp.eq.s32.totalorder %s17, 0
      %p140 = por %p138, %p139
      %p141 = scmp.ne.s32.totalorder %s127, %s128
      %p142 = scmp.eq.s32.totalorder %s18, 1
      %p143 = por %p141, %p142
      %p145 = scmp.ne.s32.totalorder %s128, %s144
      %p146 = scmp.eq.s32.totalorder %s18, 0
      %p147 = por %p145, %p146
      %p148 = scmp.le.s32.totalorder 1, %s12
      %p149 = scmp.lt.s32.totalorder %s12, 3
      %p150 = pnand %p148, %p149
      %p151 = pneg %p150
      // Predicated region
      $region9: #{tpu_custom_call.1} parent=5 // pred_check
        _
      $region10: #{tpu_custom_call.1} parent=5 // pred_check_branch
        %153 = sbr.rel (%p150) target = $region12
      $region11: #{tpu_custom_call.1} parent=5 // pred_region
        %s154 = ssub.s32 %s12, 1
        // Predicated region
        $region13: #{tpu_custom_call.1} parent=11 // pred_check
          %p155 = pneg %p112
        $region14: #{tpu_custom_call.1} parent=11 // pred_check_branch
          %157 = sbr.rel (%p155) target = $region16
        $region15: #{tpu_custom_call.1} parent=11 // pred_region
          _
        $region16: #{tpu_custom_call.1} parent=11 // pred_fallthru
          _
      $region12: #{tpu_custom_call.1} parent=5 // pred_fallthru
        _
      %p158 = scmp.lt.s32.totalorder %s12, 2
      // Predicated region
      $region17: #{tpu_custom_call.1} parent=5 // pred_check
        %p159 = pneg %p158
      $region18: #{tpu_custom_call.1} parent=5 // pred_check_branch
        %161 = sbr.rel (%p159) target = $region20
      $region19: #{tpu_custom_call.1} parent=5 // pred_region
        // Predicated region
        $region21: #{tpu_custom_call.1} parent=19 // pred_check
          %p162 = pneg %p55
        $region22: #{tpu_custom_call.1} parent=19 // pred_check_branch
          %164 = sbr.rel (%p162) target = $region24
        $region23: #{tpu_custom_call.1} parent=19 // pred_region
          %s165 = sadd.s32 %s20, %s21
          %s166 = smul.u32 2, %s165
          %p167 = scmp.lt.s32.totalorder %s19, 1
          %s168 = scalar_select %p167, %s19, 1
          %p169 = scmp.lt.s32.totalorder %s166, 1
          %s170 = scalar_select %p169, %s166, 1
          %s171 = smul.addr %s168, 2
          %s172 = sadd.s32 %s170, %s171
          %s173 = smul.addr %s172, 8
          %s174 = scalar_lea.vmem %s0, %s173
          %s175 = sadd.s32 %s20, %s21
          %s176 = smul.u32 2, %s175
        $region24: #{tpu_custom_call.1} parent=19 // pred_fallthru
          _
        // Predicated region
        $region25: #{tpu_custom_call.1} parent=19 // pred_check
          %p177 = pneg %p85
        $region26: #{tpu_custom_call.1} parent=19 // pred_check_branch
          %179 = sbr.rel (%p177) target = $region28
        $region27: #{tpu_custom_call.1} parent=19 // pred_region
          %s180 = sadd.s32 %s20, %s21
          %s181 = smul.u32 2, %s180
          %p182 = scmp.lt.s32.totalorder %s19, 1
          %s183 = scalar_select %p182, %s19, 1
          %p184 = scmp.lt.s32.totalorder %s181, 1
          %s185 = scalar_select %p184, %s181, 1
          %s186 = smul.addr %s183, 2
          %s187 = sadd.s32 %s185, %s186
          %s188 = scalar_lea.vmem %s1, %s187
          %s189 = sadd.s32 %s20, %s21
          %s190 = smul.u32 2, %s189
        $region28: #{tpu_custom_call.1} parent=19 // pred_fallthru
          _
      $region20: #{tpu_custom_call.1} parent=5 // pred_fallthru
        _
      %p191 = scmp.le.s32.totalorder 1, %s12
      %p192 = scmp.lt.s32.totalorder %s12, 3
      %p193 = pnand %p191, %p192
      %p194 = pneg %p193
      // Predicated region
      $region29: #{tpu_custom_call.1} parent=5 // pred_check
        _
      $region30: #{tpu_custom_call.1} parent=5 // pred_check_branch
        %196 = sbr.rel (%p193) target = $region32
      $region31: #{tpu_custom_call.1} parent=5 // pred_region
        %s197 = ssub.s32 %s12, 1
        %s198 = sadd.s32 %s23, %s24
        %s199 = smul.u32 2, %s198
        %p200 = scmp.lt.s32.totalorder %s22, 1
        %s201 = scalar_select %p200, %s22, 1
        %p202 = scmp.lt.s32.totalorder %s199, 1
        %s203 = scalar_select %p202, %s199, 1
        %s204 = smul.addr %s201, 2
        %s205 = sadd.s32 %s203, %s204
        %s206 = smul.addr %s205, 8
        %s207 = scalar_lea.vmem %s0, %s206
        %p208 = pneg %p61
        %p209 = pneg %p58
        %s210 = sadd.s32 %s23, %s24
        %s211 = smul.u32 2, %s210
        %p212 = scmp.lt.s32.totalorder %s22, 1
        %s213 = scalar_select %p212, %s22, 1
        %p214 = scmp.lt.s32.totalorder %s211, 1
        %s215 = scalar_select %p214, %s211, 1
        %s216 = smul.addr %s213, 2
        %s217 = sadd.s32 %s215, %s216
        %s218 = scalar_lea.vmem %s1, %s217
        %p219 = pneg %p91
        %p220 = pneg %p88
        %p221 = pneg %p112
        %p222 = pneg %p109
        %p223 = pneg %p140
        %p224 = pneg %p137
        %s225 = sand.u32 %s127, 1
        %s226 = scalar_lea.sflag [#allocation3], %s225
        %s227 = sand.u32 %s127, 1
        %s228 = smul.addr %s227, 2
        %s229 = scalar_lea.vmem [#allocation2], %s228
        %s230 = sadd.s32 %s23, %s24
        %s231 = smul.u32 2, %s230
        %p232 = scmp.lt.s32.totalorder %s22, 1
        %s233 = scalar_select %p232, %s22, 1
        %p234 = scmp.lt.s32.totalorder %s231, 1
        %s235 = scalar_select %p234, %s231, 1
        %s236 = smul.addr %s233, 2
        %s237 = sadd.s32 %s235, %s236
        %s238 = smul.addr %s237, 8
        %s239 = scalar_lea.vmem %s0, %s238
        %s240 = sadd.s32 %s23, %s24
        %s241 = smul.u32 2, %s240
        %s242 = sadd.s32 %s23, %s24
        %s243 = smul.u32 2, %s242
        %p244 = scmp.lt.s32.totalorder %s22, 1
        %s245 = scalar_select %p244, %s22, 1
        %p246 = scmp.lt.s32.totalorder %s243, 1
        %s247 = scalar_select %p246, %s243, 1
        %s248 = smul.addr %s245, 2
        %s249 = sadd.s32 %s247, %s248
        %s250 = scalar_lea.vmem %s1, %s249
        %s251 = sadd.s32 %s23, %s24
        %s252 = smul.u32 2, %s251
        %p253 = scmp.eq.s32.totalorder %s24, 0
        // Predicated region
        $region33: #{tpu_custom_call.1} parent=31 // pred_check
          %p254 = pneg %p253
        $region34: #{tpu_custom_call.1} parent=31 // pred_check_branch
          %256 = sbr.rel (%p254) target = $region36
        $region35: #{tpu_custom_call.1} parent=31 // pred_region
          %v257 = vlaneseq
          %vm258 = vcmp.ge.s32.totalorder %v257, 0
          %vm259 = vcmp.lt.s32.totalorder %v257, 256
          %vm260 = vmand %vm258, %vm259
          %261 = vst.msk [vmem:[%s229] sm:$0x3] %vm260, 0.0
        $region36: #{tpu_custom_call.1} parent=31 // pred_fallthru
          _
        %v262 = vld [vmem:[%s239] sm:$0x3f]
        %v263 = vld [vmem:[%s239 + $0x8] sm:$0x3f]
        %vm264 = vcmask 1045504
        %v265 = vsel %vm264, %v262, -inf
        %v266 = vrot.slane %v265, 4
        %v267 = vmax.f32 %v265, %v266
        %v268 = vrot.slane %v267, 2
        %v269 = vmax.f32 %v267, %v268
        %v270 = vrot.slane %v269, 1
        %v271 = vmax.f32 %v269, %v270
        %v272 = vsel %vm264, %v263, -inf
        %v273 = vrot.slane %v272, 4
        %v274 = vmax.f32 %v272, %v273
        %v275 = vrot.slane %v274, 2
        %v276 = vmax.f32 %v274, %v275
        %v277 = vrot.slane %v276, 1
        %v278 = vmax.f32 %v276, %v277
        %v279 = vsub.f32 %v262, %v271
        %v280 = vsub.f32 %v263, %v278
        %v281 = vmul.f32 %v279, 1.442695
        %v282 = vpow.pop %v281
        %v283 = vmul.f32 %v280, 1.442695
        %v284 = vpow.pop %v283
        %v285 = vsel %vm264, %v282, 0.0
        %v286 = vrot.slane %v285, 4
        %v287 = vadd.f32 %v285, %v286
        %v288 = vrot.slane %v287, 2
        %v289 = vadd.f32 %v287, %v288
        %v290 = vrot.slane %v289, 1
        %v291 = vadd.f32 %v289, %v290
        %v292 = vsel %vm264, %v284, 0.0
        %v293 = vrot.slane %v292, 4
        %v294 = vadd.f32 %v292, %v293
        %v295 = vrot.slane %v294, 2
        %v296 = vadd.f32 %v294, %v295
        %v297 = vrot.slane %v296, 1
        %v298 = vadd.f32 %v296, %v297
        %v299 = vld [vmem:[%s250] sm:$0x3]
        %v300 = vlaneseq
        %v301 = vshrl.u32 %v300, 7
        %v302 = vperm.slane %v299, 0
        %v303 = vperm.slane %v299, 1
        %vm304 = vcmp.eq.s32.totalorder %v301, %v302
        %vm305 = vcmp.eq.s32.totalorder %v301, %v303
        %v306 = vsel %vm304, %v282, 0.0
        %v307 = vsel %vm305, %v284, 0.0
        %v308 = vsel %vm264, %v306, 0.0
        %v309 = vrot.slane %v308, 4
        %v310 = vadd.f32 %v308, %v309
        %v311 = vrot.slane %v310, 2
        %v312 = vadd.f32 %v310, %v311
        %v313 = vrot.slane %v312, 1
        %v314 = vadd.f32 %v312, %v313
        %v315 = vsel %vm264, %v307, 0.0
        %v316 = vrot.slane %v315, 4
        %v317 = vadd.f32 %v315, %v316
        %v318 = vrot.slane %v317, 2
        %v319 = vadd.f32 %v317, %v318
        %v320 = vrot.slane %v319, 1
        %v321 = vadd.f32 %v319, %v320
        %v322 = vld [vmem:[%s2] sm:$0x3f]
        %324 = vset.pattern.permute.xlu0 0
        %325 = vperm.xlu0 %324, %v322
        %v326 = vpop.permute.xlu0 %325
        %v328 = vsel %vm304, %v326, 0.0
        %v329 = vsel %vm305, %v326, 0.0
        %v330 = vsel %vm264, %v328, 0.0
        %v331 = vrot.slane %v330, 4
        %v332 = vadd.f32 %v330, %v331
        %v333 = vrot.slane %v332, 2
        %v334 = vadd.f32 %v332, %v333
        %v335 = vrot.slane %v334, 1
        %v336 = vadd.f32 %v334, %v335
        %v337 = vsel %vm264, %v329, 0.0
        %v338 = vrot.slane %v337, 4
        %v339 = vadd.f32 %v337, %v338
        %v340 = vrot.slane %v339, 2
        %v341 = vadd.f32 %v339, %v340
        %v342 = vrot.slane %v341, 1
        %v343 = vadd.f32 %v341, %v342
        %v344 = vrcp.pop %v291
        %v345 = vrcp.pop %v298
        %v346 = vmul.f32 %v314, %v344
        %v347 = vmul.f32 %v321, %v345
        %v348 = vsub.f32 1.0, %v346
        %v349 = vsub.f32 1.0, %v347
        %v350 = vmul.f32 %v348, %v348
        %v351 = vmul.f32 %v349, %v349
        %v352 = vadd.f32 %v346, 1e-07
        %v353 = vadd.f32 %v347, 1e-07
        %v354 = vlog2.pop %v352
        %v355 = vmul.f32 %v354, 0.6931472
        %v356 = vlog2.pop %v353
        %v357 = vmul.f32 %v356, 0.6931472
        %v358 = vmul.f32 %v336, %v355
        %v359 = vmul.f32 %v343, %v357
        %v360 = vmul.f32 %v350, %v358
        %v361 = vmul.f32 %v351, %v359
        %v362 = vld [vmem:[%s229] sm:$0x3]
        %v365 = vrot.slane %v361, 7
        %vm366 = vcmask 1040384
        %v367 = vsel %vm366, %v360, %v365
        %v369 = vsub.f32 %v362, %v367
        %v370 = vlaneseq
        %vm371 = vcmp.ge.s32.totalorder %v370, 0
        %vm372 = vcmp.lt.s32.totalorder %v370, 256
        %vm373 = vmand %vm371, %vm372
        %374 = vst.msk [vmem:[%s229] sm:$0x3] %vm373, %v369
        %s375 = sand.u32 %s127, 1
        %s376 = scalar_lea.sflag [#allocation3], %s375
        %s377 = sand.u32 %s127, 1
        %s378 = smul.addr %s377, 2
        %s379 = scalar_lea.vmem [#allocation2], %s378
        // Predicated region
        $region37: #{tpu_custom_call.1} parent=31 // pred_check
          %p380 = pneg %p137
        $region38: #{tpu_custom_call.1} parent=31 // pred_check_branch
          %382 = sbr.rel (%p380) target = $region40
        $region39: #{tpu_custom_call.1} parent=31 // pred_region
          %384 = vsyncadd %s376, 0
          %s385 = smul.addr %s23, 2
          %s386 = smul.addr %s22, 2
          %s387 = sadd.s32 %s385, %s386
          %s388 = scalar_lea.hbm %s3, %s387
          %s390 = sshll.u32 %s379, 4
          %s391 = int_to_ptr.vmem [resolvable:$true] %s390
          %s392 = sshll.u32 %s388, 4
          %s393 = int_to_ptr.hbm [resolvable:$true] %s392
          %395 = dma.vmem_to_hbm [thread:$0]  %s391, 32, %s393, %s376
        $region40: #{tpu_custom_call.1} parent=31 // pred_fallthru
          _
      $region32: #{tpu_custom_call.1} parent=5 // pred_fallthru
        _
      %p396 = scmp.le.s32.totalorder 2, %s12
      // Predicated region
      $region41: #{tpu_custom_call.1} parent=5 // pred_check
        %p397 = pneg %p396
      $region42: #{tpu_custom_call.1} parent=5 // pred_check_branch
        %399 = sbr.rel (%p397) target = $region44
      $region43: #{tpu_custom_call.1} parent=5 // pred_region
        %s400 = ssub.s32 %s12, 2
        // Predicated region
        $region45: #{tpu_custom_call.1} parent=43 // pred_check
          %p401 = pneg %p143
        $region46: #{tpu_custom_call.1} parent=43 // pred_check_branch
          %403 = sbr.rel (%p401) target = $region48
        $region47: #{tpu_custom_call.1} parent=43 // pred_region
          %s404 = sand.u32 %s128, 1
          %s405 = scalar_lea.sflag [#allocation3], %s404
          %s406 = sand.u32 %s128, 1
          %s407 = smul.addr %s406, 2
          %s408 = scalar_lea.vmem [#allocation2], %s407
          %410 = dma.done %s405, 32
        $region48: #{tpu_custom_call.1} parent=43 // pred_fallthru
          _
      $region44: #{tpu_custom_call.1} parent=5 // pred_fallthru
        _
    $region6: #{tpu_custom_call.1} parent=1 // loop_footer
      %s16 = sadd.s32 1, %s12
    $region7: #{tpu_custom_call.1} parent=1 // loop_footer_branch
      %11 = sbr.rel target = $region3
    $region8: #{tpu_custom_call.1} parent=1 // loop_exit
      _
    %411 = vsyncpa [#allocation3], 1
    %s412 = scalar_lea.sflag [#allocation3], 1
    %413 = vsyncpa %s412, 1

</llo_original>
